<compile_context>
chip_gen: v5e
topology: v5e:2x2
jax: 0.10.0
libtpu: 0.0.40
codegen_flags: <defaults>
</compile_context>

<pallas_src>
import functools

import jax
import jax.numpy as jnp
from jax.experimental import pallas as pl
from jax.experimental.pallas import tpu as pltpu

# SELU constants (match torch.nn.SELU)
_SELU_SCALE = 1.0507009873554804934193349852946
_SELU_ALPHA = 1.6732632423543772848170429916717

_TARGET_BLOCK_BYTES = 4 * 1024 * 1024   # ~4 MiB blocks -> 16 MiB double-buffered
_MAX_BLOCK_COLS = 4096                  # lane-dense block width cap (multiple of 128)
_VMEM_LIMIT = 32 * 1024 * 1024          # safe on v5e / v6e / v7x


def _round_up(v, m):
    return ((v + m - 1) // m) * m


def _pick_lane_cols(total):
    """Largest lane-dense (multiple-of-128) column width that divides `total`."""
    for cand in (4096, 2048, 1024, 512, 256, 128):
        if total % cand == 0:
            return cand
    return None


def _choose_blocks(rows, cols, itemsize):
    """Pick (block_rows, block_cols) for a (rows, cols) array.

    Last-dim blocks are either the full dim (ragged allowed) or a multiple of
    128; row blocks are the full dim or a multiple of 8.  Ragged boundary
    blocks are handled by Pallas masking (no pad / slice needed).
    """
    target_elems = max(_TARGET_BLOCK_BYTES // itemsize, 8 * 128)
    block_cols = cols if cols <= _MAX_BLOCK_COLS else _MAX_BLOCK_COLS
    max_rows = max(8, target_elems // block_cols)
    if rows <= max_rows:
        block_rows = rows
    else:
        block_rows = (max_rows // 8) * 8
    # v7x megacore: if the whole tensor fits in one block, split rows so the
    # "parallel" grid has >= 2 steps (one per TensorCore).  Rows < 16 cannot
    # be split below a sublane and are trivially small anyway.
    if block_rows == rows and block_cols == cols and rows >= 16:
        block_rows = _round_up(-(-rows // 2), 8)
    return block_rows, block_cols


# ---------------------------------------------------------------------------
# Kernels
# ---------------------------------------------------------------------------
def _act_kernel(x_ref, o_ref, *, relu_type):
    x = x_ref[...]
    if relu_type == "relu":
        y = jnp.maximum(x, 0)
    elif relu_type == "leakyrelu":
        y = jnp.where(x > 0, x, 0.2 * x).astype(x.dtype)
    elif relu_type == "selu":
        xf = x.astype(jnp.float32)  # f32 only for the EUP exp path
        yf = _SELU_SCALE * jnp.where(xf > 0.0, xf, _SELU_ALPHA * (jnp.exp(xf) - 1.0))
        y = yf.astype(x.dtype)
    else:
        raise ValueError(f"Relu type {relu_type} not support.")
    o_ref[...] = y.astype(o_ref.dtype)


def _prelu_kernel(x_ref, a_ref, o_ref):
    x = x_ref[...]
    a = a_ref[...]  # (block_rows, 1) -> broadcasts across lanes
    o_ref[...] = jnp.where(x > 0, x, a * x).astype(o_ref.dtype)


# ---------------------------------------------------------------------------
# Pallas wrappers (no pad, no slice; boundary masking handles ragged blocks)
# ---------------------------------------------------------------------------
def _act_call(x2d, relu_type):
    rows, cols = x2d.shape
    itemsize = x2d.dtype.itemsize
    block_rows, block_cols = _choose_blocks(rows, cols, itemsize)
    grid = (pl.cdiv(rows, block_rows), pl.cdiv(cols, block_cols))
    total = rows * cols
    kernel = functools.partial(_act_kernel, relu_type=relu_type)
    return pl.pallas_call(
        kernel,
        out_shape=jax.ShapeDtypeStruct((rows, cols), x2d.dtype),
        grid_spec=pltpu.PrefetchScalarGridSpec(
            num_scalar_prefetch=0,
            grid=grid,
            in_specs=[pl.BlockSpec((block_rows, block_cols), lambda i, j: (i, j))],
            out_specs=pl.BlockSpec((block_rows, block_cols), lambda i, j: (i, j)),
        ),
        compiler_params=pltpu.CompilerParams(
            dimension_semantics=("parallel", "parallel"),
            vmem_limit_bytes=_VMEM_LIMIT,
        ),
        cost_estimate=pl.CostEstimate(
            flops=2 * total,
            transcendentals=total if relu_type == "selu" else 0,
            bytes_accessed=2 * total * itemsize,
        ),
    )(x2d)


def _prelu_call(x2d, alpha_col):
    rows, cols = x2d.shape
    itemsize = x2d.dtype.itemsize
    block_rows, block_cols = _choose_blocks(rows, cols, itemsize)
    grid = (pl.cdiv(rows, block_rows), pl.cdiv(cols, block_cols))
    total = rows * cols
    return pl.pallas_call(
        _prelu_kernel,
        out_shape=jax.ShapeDtypeStruct((rows, cols), x2d.dtype),
        grid_spec=pltpu.PrefetchScalarGridSpec(
            num_scalar_prefetch=0,
            grid=grid,
            in_specs=[
                pl.BlockSpec((block_rows, block_cols), lambda i, j: (i, j)),
                # Column axis (j) is innermost, so (i, 0) is constant across
                # consecutive grid steps and the tiny alpha DMA is not re-issued.
                pl.BlockSpec((block_rows, 1), lambda i, j: (i, 0)),
            ],
            out_specs=pl.BlockSpec((block_rows, block_cols), lambda i, j: (i, j)),
        ),
        compiler_params=pltpu.CompilerParams(
            dimension_semantics=("parallel", "parallel"),
            vmem_limit_bytes=_VMEM_LIMIT,
        ),
        cost_estimate=pl.CostEstimate(
            flops=2 * total,
            transcendentals=0,
            bytes_accessed=2 * total * itemsize + rows * itemsize,
        ),
    )(x2d, alpha_col)


@functools.partial(jax.jit, static_argnames=("relu_type",))
def _relu_forward(x, prelu_weight, relu_type):
    n, c, h, w = x.shape
    if relu_type == "prelu":
        # Per-row alpha (row = n*C + c -> channel c), broadcast over H*W lanes.
        x2d = x.reshape(n * c, h * w)
        alpha_col = jnp.broadcast_to(
            prelu_weight.astype(x.dtype)[None, :], (n, c)
        ).reshape(n * c, 1)
        y2d = _prelu_call(x2d, alpha_col)
        return y2d.reshape(n, c, h, w)

    # relu / leakyrelu / selu: pick a lane-dense 2-D view when the element
    # count allows it (free reshape); otherwise use (N*C, H*W) and rely on
    # boundary masking.  Either way: no pad, no slice.
    total = n * c * h * w
    cols = _pick_lane_cols(total)
    x2d = x.reshape(total // cols, cols) if cols is not None else x.reshape(n * c, h * w)
    y2d = _act_call(x2d, relu_type)
    return y2d.reshape(n, c, h, w)


# ---------------------------------------------------------------------------
# Module
# ---------------------------------------------------------------------------
class ReluLayer:
    """JAX/Pallas port of models/common.py::ReluLayer.

    relu_type in {'relu', 'leakyrelu', 'prelu', 'selu', 'none'}.
    The PReLU per-channel weight is initialized to 0.25 (nn.PReLU default).
    """

    def __init__(self, channels, relu_type="relu"):
        self.relu_type = relu_type.lower()
        assert self.relu_type in ("relu", "leakyrelu", "prelu", "selu", "none"), \
            f"Relu type {relu_type} not support."
        self.channels = channels
        self.prelu_weight = jnp.full((channels,), 0.25, dtype=jnp.float32)

    def __call__(self, x):
        # x: NCHW
        n, c, h, w = x.shape
        assert c == self.channels
        if self.relu_type == "none":
            return x  # identity: no kernel launch, no HBM round trip
        return _relu_forward(x, self.prelu_weight, self.relu_type)


# ---------------------------------------------------------------------------
# Reference + self-test
# ---------------------------------------------------------------------------
def _reference(x, relu_type, prelu_weight):
    relu_type = relu_type.lower()
    if relu_type == "relu":
        return jnp.maximum(x, 0.0)
    if relu_type == "leakyrelu":
        return jnp.where(x > 0, x, 0.2 * x)
    if relu_type == "prelu":
        a = prelu_weight.reshape(1, -1, 1, 1).astype(x.dtype)
        return jnp.where(x > 0, x, a * x)
    if relu_type == "selu":
        return jax.nn.selu(x)
    return x


if __name__ == "__main__":
    key = jax.random.PRNGKey(0)
    k1, k2, k3, k4 = jax.random.split(key, 4)

    # Small deterministic test shapes:
    #  - (2,4,16,16): lane-dense divisible path
    #  - (2,3,15,13): ragged, full-dim single block
    #  - (1,3,65,65): ragged, exercises boundary-masked column blocks
    #  - (2,32,32,32): exercises the v7x row-split (>=2 parallel grid steps)
    test_cases = [
        jax.random.normal(k1, (2, 4, 16, 16), dtype=jnp.float32),
        jax.random.normal(k2, (2, 3, 15, 13), dtype=jnp.float32),
        jax.random.normal(k3, (1, 3, 65, 65), dtype=jnp.float32),
        jax.random.normal(k4, (2, 32, 32, 32), dtype=jnp.float32),
    ]

    ok = True
    for x in test_cases:
        C = x.shape[1]
        for relu_type in ("relu", "leakyrelu", "prelu", "selu", "none"):
            layer = ReluLayer(C, relu_type)
            y = layer(x)
            jax.block_until_ready(y)
            y_ref = _reference(x, relu_type, layer.prelu_weight)
            if y.shape != x.shape or not jnp.allclose(y, y_ref, atol=1e-5, rtol=1e-5):
                ok = False
                print(f"MISMATCH for {relu_type} shape={x.shape}")

    if ok:
        print("KERNEL_OK")
</pallas_src>

<mosaic_0001>
module attributes {stable_mosaic.version = 11 : i64} {
  func.func @_act_kernel(%arg0: i32, %arg1: i32, %arg2: memref<1x2048xf32, #tpu.memory_space<vmem>>, %arg3: memref<1x2048xf32, #tpu.memory_space<vmem>>) attributes {dimension_semantics = [#tpu.dimension_semantics<parallel>, #tpu.dimension_semantics<parallel>], iteration_bounds = array<i64: 1, 1>, scalar_prefetch = 0 : i64, scratch_operands = 0 : i64, tpu.core_type = #tpu.core_type<tc>, window_params = [{transform_indices = @transform_0, window_bounds = array<i64: 1, 2048>}, {transform_indices = @transform_1, window_bounds = array<i64: 1, 2048>}]} {
    %c0 = arith.constant 0 : index
    %c0_0 = arith.constant 0 : index
    %0 = vector.load %arg2[%c0, %c0_0] : memref<1x2048xf32, #tpu.memory_space<vmem>>, vector<1x2048xf32>
    %cst = arith.constant 0.000000e+00 : f32
    %1 = vector.broadcast %cst : f32 to vector<1x2048xf32>
    %2 = arith.maximumf %0, %1 : vector<1x2048xf32>
    %c0_1 = arith.constant 0 : index
    %c0_2 = arith.constant 0 : index
    %3 = vector.load %arg3[%c0_1, %c0_2] : memref<1x2048xf32, #tpu.memory_space<vmem>>, vector<1x2048xf32>
    tpu.vector_store %arg3[%c0_1, %c0_2], %2 {strides = array<i32>} : memref<1x2048xf32, #tpu.memory_space<vmem>>, vector<1x2048xf32>,
    return
  }
  func.func @transform_0(%arg0: i32, %arg1: i32) -> (i32, i32) {
    %c0_i32 = arith.constant 0 : i32
    return %arg0, %arg1 : i32, i32
  }
  func.func @transform_1(%arg0: i32, %arg1: i32) -> (i32, i32) {
    %c0_i32 = arith.constant 0 : i32
    return %arg0, %arg1 : i32, i32
  }
}

</mosaic_0001>

<llo_original>
// kernel: _relu_forward.1
$region0: #{_relu_forward.1}
  #allocation0 [shape = 'u32[]', space=smem, size = 0x4, offset = 0x4, fixed_abs, tag = 'smem constant byte address 0x4 - core index']
  #allocation1 [shape = 'u32[72,128]{1,0:T(1,128)}', space=vmem, size = 0x9000, scoped, tag = 'internal scratch']
  %s0 = inlined_call_operand.vmem [shape: f32[1,2048], index: 0, kind: input, shape index: {}]
  %s1 = inlined_call_operand.vmem [shape: f32[1,2048], index: 1, kind: output, shape index: {}]
  %s2 = sld [smem:[#allocation0]]
  $region14: #{_relu_forward.1} parent=0
    _
  %s4 = ssub.s32 1, %s2
  %s5 = scalar_select 0, %s4, %s2
  // Predicated region
  $region2: #{_relu_forward.1} parent=0 // pred_check
    _
  $region3: #{_relu_forward.1} parent=0 // pred_check_branch
    %7 = sbr.rel (0) target = $region5
  $region4: #{_relu_forward.1} parent=0 // pred_region
    _
  $region5: #{_relu_forward.1} parent=0 // pred_fallthru
    _
  %v8 = vld [vmem:[%s0] sm:$0xff]
  %v9 = vld [vmem:[%s0 + $0x8] sm:$0xff]
  %v10 = vmax.f32 %v8, 0.0
  %v11 = vmax.f32 %v9, 0.0
  %12 = vst [vmem:[%s1] sm:$0xff] %v10
  %13 = vst [vmem:[%s1 + $0x8] sm:$0xff] %v11
  // Predicated region
  $region6: #{_relu_forward.1} parent=0 // pred_check
    _
  $region7: #{_relu_forward.1} parent=0 // pred_check_branch
    %15 = sbr.rel (0) target = $region9
  $region8: #{_relu_forward.1} parent=0 // pred_region
    _
  $region9: #{_relu_forward.1} parent=0 // pred_fallthru
    _
  // Predicated region
  $region10: #{_relu_forward.1} parent=0 // pred_check
    _
  $region11: #{_relu_forward.1} parent=0 // pred_check_branch
    %17 = sbr.rel (0) target = $region13
  $region12: #{_relu_forward.1} parent=0 // pred_region
    _
  $region13: #{_relu_forward.1} parent=0 // pred_fallthru
    _

</llo_original>
